<compile_context>
chip_gen: v5e
topology: v5e:2x2
jax: 0.10.0
libtpu: 0.0.40
codegen_flags: <defaults>
</compile_context>

<pallas_src>
import jax
import jax.numpy as jnp
from jax.experimental import pallas as pl
from jax.experimental.pallas import tpu as pltpu


def _round_up(x, m):
    return ((x + m - 1) // m) * m


def _padded_vmem_bytes(rows, cols, itemsize=4):
    """VMEM footprint of a (rows, cols) f32 buffer including (8, 128) padding."""
    return _round_up(max(rows, 1), 8) * _round_up(max(cols, 1), 128) * itemsize


def _vmem_capacity_bytes():
    """Physical VMEM of the attached TPU; conservative fallback (v7x = 64 MiB)."""
    try:
        return int(pltpu.get_tpu_info().vmem_capacity_bytes)
    except Exception:
        return 64 * 1024 * 1024


# --------------------------------------------------------------------------- #
# Fast path: embedding tables VMEM-resident, gather = dynamic VMEM row loads. #
# --------------------------------------------------------------------------- #
def gmf_vmem_kernel(uidx_ref, iidx_ref,      # SMEM scalar prefetch: (B_pad,) i32
                    uemb_ref, iemb_ref,      # VMEM-resident tables (U, D), (I, D)
                    w_ref, b_ref,            # VMEM (1, D), SMEM (1,)
                    o_ref,                   # VMEM (1, 1, TB)
                    prod_ref):               # VMEM scratch (TB, D)
    tb = prod_ref.shape[0]
    base = pl.program_id(0) * tb

    # Fused gather from VMEM-resident tables: one dynamic row load per batch
    # element and NO HBM DMA descriptors (the descriptor/latency bottleneck of
    # the previous version disappears entirely on this path).
    @pl.loop(0, tb)
    def _gather(r):
        u = uidx_ref[base + r]
        it = iidx_ref[base + r]
        prod_ref[pl.ds(r, 1), :] = (uemb_ref[pl.ds(u, 1), :] *
                                    iemb_ref[pl.ds(it, 1), :])

    # Linear(D -> 1): VPU multiply + lane reduce (deliberately not an MXU matvec).
    logits = jnp.sum(prod_ref[...] * w_ref[...], axis=-1) + b_ref[0]
    # Lane-dense store: (1, 1, TB) slab, TB % 128 == 0 -> unmasked vst.
    o_ref[...] = logits.reshape(o_ref.shape).astype(o_ref.dtype)


# --------------------------------------------------------------------------- #
# Slow path: tables in HBM, per-row DMAs with aggregate waits and cross-tile  #
# double buffering.                                                           #
# --------------------------------------------------------------------------- #
def gmf_hbm_kernel(uidx_ref, iidx_ref,       # SMEM scalar prefetch: (B_pad,) i32
                   uemb_hbm, iemb_hbm,       # HBM refs (U, D), (I, D)
                   w_ref, b_ref,             # VMEM (1, D), SMEM (1,)
                   o_ref,                    # VMEM (1, 1, TB)
                   ubuf, ibuf,               # VMEM (2*TB, D): two TB-row slots
                   sem):                     # DMA sems (2 tables, 2 slots)
    tb = ubuf.shape[0] // 2
    t = pl.program_id(0)
    nt = pl.num_programs(0)
    slot = t % 2

    def issue_tile(tile, s):
        base = tile * tb
        row0 = s * tb
        # One row DMA per batch element per table; all copies of a (table,
        # slot) pair share one semaphore so a single aggregate wait covers them.
        @pl.loop(0, tb)
        def _issue(r):
            pltpu.make_async_copy(uemb_hbm.at[uidx_ref[base + r]],
                                  ubuf.at[row0 + r], sem.at[0, s]).start()
            pltpu.make_async_copy(iemb_hbm.at[iidx_ref[base + r]],
                                  ibuf.at[row0 + r], sem.at[1, s]).start()

    # Prime the pipeline: tile 0 -> slot 0 on the first grid step only.
    # (Requires sequential grid execution -> dimension_semantics=("arbitrary",).)
    @pl.when(t == 0)
    def _prime():
        issue_tile(0, 0)

    # Cross-tile double buffering: issue tile t+1's rows into the other slot
    # now, so those DMAs overlap with this tile's compute, store and per-step
    # overhead instead of serializing issue -> wait -> compute.
    @pl.when(t + 1 < nt)
    def _prefetch():
        issue_tile(t + 1, 1 - slot)

    # Two aggregate waits (one per table) instead of 2*TB per-row waits.
    # Every row copy has identical size and DMA semaphores count bytes, so a
    # single (TB, D)-sized descriptor waits for all TB row copies of this slot.
    off = pl.multiple_of(slot * tb, tb)
    cur_u = ubuf.at[pl.ds(off, tb), :]
    cur_i = ibuf.at[pl.ds(off, tb), :]
    pltpu.make_async_copy(cur_u, cur_u, sem.at[0, slot]).wait()
    pltpu.make_async_copy(cur_i, cur_i, sem.at[1, slot]).wait()

    logits = jnp.sum(cur_u[...] * cur_i[...] * w_ref[...], axis=-1) + b_ref[0]
    o_ref[...] = logits.reshape(o_ref.shape).astype(o_ref.dtype)


# --------------------------------------------------------------------------- #
# Wrapper                                                                     #
# --------------------------------------------------------------------------- #
def gmf_forward(user, item, user_embed, item_embed, w, b, *,
                block_b=1024, force_hbm_gather=False):
    """user, item: (B,) int ids. Returns (B,) float32 logits (== GMF.forward)."""
    B = int(user.shape[0])
    U, D = int(user_embed.shape[0]), int(user_embed.shape[1])
    I = int(item_embed.shape[0])

    # VMEM budget, generation-aware (v7x: 64 MiB physical, v5e/v6e: 128 MiB).
    cap = _vmem_capacity_bytes()
    vmem_limit = max(24 << 20, min(int(cap * 0.45), 56 << 20))

    # Batch tile size: multiple of 128 (lane-dense output), clamped for small B.
    TB = _round_up(block_b, 128)
    TB = min(TB, _round_up(B, 128))
    if B > 128:  # keep >= 2 tiles so megacore has work for both TensorCores
        TB = min(TB, _round_up(-(-B // 2), 128))
    # Cap TB so the HBM-gather double-buffered scratch (incl. lane padding of
    # D < 128 buffers) stays well inside the budget.
    tb_cap = (vmem_limit // 2) // (4 * _round_up(D, 128) * 4)
    TB = max(128, min(TB, (tb_cap // 128) * 128))

    B_pad = _round_up(B, TB)
    num_tiles = B_pad // TB
    pad = B_pad - B

    # Padded index vectors (padded rows gather row 0; results are sliced off).
    user_p = jnp.pad(user.astype(jnp.int32), (0, pad))
    item_p = jnp.pad(item.astype(jnp.int32), (0, pad))

    w2 = w.reshape(1, D).astype(jnp.float32)     # nn.Linear weight (1, D)
    b1 = b.reshape(1).astype(jnp.float32)        # nn.Linear bias (1,)
    uemb = user_embed.astype(jnp.float32)
    iemb = item_embed.astype(jnp.float32)

    out_shape = jax.ShapeDtypeStruct((num_tiles, 1, TB), jnp.float32)
    out_spec = pl.BlockSpec((1, 1, TB), lambda t, u, i: (t, 0, 0))
    w_spec = pl.BlockSpec((1, D), lambda t, u, i: (0, 0))
    b_spec = pl.BlockSpec(memory_space=pltpu.MemorySpace.SMEM)

    # Fast-path footprint estimate: tables counted twice (pipeline buffers),
    # product scratch, output blocks, plus slack -- all lane-padding aware.
    table_bytes = _padded_vmem_bytes(U, D) + _padded_vmem_bytes(I, D)
    fast_bytes = (2 * table_bytes + _padded_vmem_bytes(TB, D)
                  + 2 * _padded_vmem_bytes(8, TB) + (1 << 20))
    use_fast = (not force_hbm_gather) and fast_bytes <= int(0.9 * vmem_limit)

    if use_fast:
        grid_spec = pltpu.PrefetchScalarGridSpec(
            num_scalar_prefetch=2,               # user ids, item ids -> SMEM
            grid=(num_tiles,),
            in_specs=[
                pl.BlockSpec((U, D), lambda t, u, i: (0, 0)),   # user table, VMEM-resident
                pl.BlockSpec((I, D), lambda t, u, i: (0, 0)),   # item table, VMEM-resident
                w_spec, b_spec,
            ],
            out_specs=out_spec,
            scratch_shapes=[pltpu.VMEM((TB, D), jnp.float32)],  # u*i products
        )
        kernel = gmf_vmem_kernel
        dims = ("parallel",)      # tiles fully independent -> megacore-safe
    else:
        grid_spec = pltpu.PrefetchScalarGridSpec(
            num_scalar_prefetch=2,
            grid=(num_tiles,),
            in_specs=[
                pl.BlockSpec(memory_space=pl.ANY),              # user table (HBM)
                pl.BlockSpec(memory_space=pl.ANY),              # item table (HBM)
                w_spec, b_spec,
            ],
            out_specs=out_spec,
            scratch_shapes=[
                pltpu.VMEM((2 * TB, D), jnp.float32),   # gathered user rows, 2 slots
                pltpu.VMEM((2 * TB, D), jnp.float32),   # gathered item rows, 2 slots
                pltpu.SemaphoreType.DMA((2, 2)),        # [table, slot]
            ],
        )
        kernel = gmf_hbm_kernel
        # Cross-tile double buffering assumes sequential grid execution.
        dims = ("arbitrary",)

    out = pl.pallas_call(
        kernel,
        grid_spec=grid_spec,
        out_shape=out_shape,
        compiler_params=pltpu.CompilerParams(
            dimension_semantics=dims,
            vmem_limit_bytes=int(vmem_limit),
        ),
    )(user_p, item_p, uemb, iemb, w2, b1)

    # (num_tiles, 1, TB) -> (B_pad,) -> drop padding -> (B,)  (== .squeeze()).
    return out.reshape(B_pad)[:B]


if __name__ == "__main__":
    def reference(user, item, ue, ie, w, b):
        return (jnp.take(ue, user, axis=0) * jnp.take(ie, item, axis=0)) @ w[0] + b[0]

    def make_case(key, user_num, item_num, embed_dim, batch):
        k_ue, k_ie, k_w, k_b, k_u, k_i = jax.random.split(key, 6)
        # nn.Embedding default init: N(0, 1); nn.Linear: U(-1/sqrt(D), 1/sqrt(D)).
        ue = jax.random.normal(k_ue, (user_num, embed_dim), dtype=jnp.float32)
        ie = jax.random.normal(k_ie, (item_num, embed_dim), dtype=jnp.float32)
        bound = 1.0 / (embed_dim ** 0.5)
        w = jax.random.uniform(k_w, (1, embed_dim), minval=-bound, maxval=bound,
                               dtype=jnp.float32)
        b = jax.random.uniform(k_b, (1,), minval=-bound, maxval=bound,
                               dtype=jnp.float32)
        user = jax.random.randint(k_u, (batch,), 0, user_num, dtype=jnp.int32)
        item = jax.random.randint(k_i, (batch,), 0, item_num, dtype=jnp.int32)
        return user, item, ue, ie, w, b

    key = jax.random.PRNGKey(0)
    cases = [
        # (user_num, item_num, embed_dim, batch)
        (64, 128, 32, 8),        # module-scale smoke test (single tile)
        (1000, 2000, 32, 300),   # multi-tile: exercises padding + double buffer
    ]
    for (un, inum, d, bsz) in cases:
        key, sub = jax.random.split(key)
        user, item, ue, ie, w, b = make_case(sub, un, inum, d, bsz)
        ref = reference(user, item, ue, ie, w, b)
        for force_hbm in (False, True):   # exercise both the VMEM and HBM paths
            got = gmf_forward(user, item, ue, ie, w, b, force_hbm_gather=force_hbm)
            jax.block_until_ready(got)
            assert got.shape == (bsz,), (got.shape, bsz)
            max_err = float(jnp.max(jnp.abs(got - ref)))
            assert jnp.allclose(got, ref, atol=1e-4, rtol=1e-4), (
                "mismatch", force_hbm, un, inum, d, bsz, max_err)

    print("KERNEL_OK")
</pallas_src>

<mosaic_0001>
module attributes {stable_mosaic.version = 11 : i64} {
  func.func @gmf_vmem_kernel(%arg0: i32, %arg1: memref<128xi32, #tpu.memory_space<smem>>, %arg2: memref<128xi32, #tpu.memory_space<smem>>, %arg3: memref<64x32xf32, #tpu.memory_space<vmem>>, %arg4: memref<128x32xf32, #tpu.memory_space<vmem>>, %arg5: memref<1x32xf32, #tpu.memory_space<vmem>>, %arg6: memref<1xf32, #tpu.memory_space<smem>>, %arg7: memref<1x1x128xf32, #tpu.memory_space<vmem>>, %arg8: memref<128x32xf32, #tpu.memory_space<vmem>>) attributes {dimension_semantics = [#tpu.dimension_semantics<parallel>], iteration_bounds = array<i64: 1>, scalar_prefetch = 2 : i64, scratch_operands = 1 : i64, tpu.core_type = #tpu.core_type<tc>, window_params = [{pipeline_mode = #tpu.pipeline_mode<synchronous>, transform_indices = @transform_0, window_bounds = array<i64: 64, 32>}, {pipeline_mode = #tpu.pipeline_mode<synchronous>, transform_indices = @transform_1, window_bounds = array<i64: 128, 32>}, {pipeline_mode = #tpu.pipeline_mode<synchronous>, transform_indices = @transform_2, window_bounds = array<i64: 1, 32>}, {transform_indices = @transform_3, window_bounds = array<i64: 1>}, {transform_indices = @transform_4, window_bounds = array<i64: 1, 1, 128>}]} {
    %c128_i32 = arith.constant 128 : i32
    %0 = arith.muli %arg0, %c128_i32 : i32
    %c0_i32 = arith.constant 0 : i32
    %c128_i32_0 = arith.constant 128 : i32
    %1 = arith.addi %c0_i32, %c128_i32_0 : i32
    %c1_i32 = arith.constant 1 : i32
    scf.for %arg9 = %c0_i32 to %1 step %c1_i32  : i32 {
      %c1_i32_9 = arith.constant 1 : i32
      %12 = arith.muli %arg9, %c1_i32_9 : i32
      %c0_i32_10 = arith.constant 0 : i32
      %13 = arith.addi %c0_i32_10, %12 : i32
      %14 = arith.addi %0, %13 : i32
      %15 = arith.index_cast %14 : i32 to index
      %16 = memref.load %arg1[%15] : memref<128xi32, #tpu.memory_space<smem>>
      %17 = arith.addi %0, %13 : i32
      %18 = arith.index_cast %17 : i32 to index
      %19 = memref.load %arg2[%18] : memref<128xi32, #tpu.memory_space<smem>>
      %20 = arith.index_cast %16 : i32 to index
      %c0_11 = arith.constant 0 : index
      %21 = vector.load %arg3[%20, %c0_11] : memref<64x32xf32, #tpu.memory_space<vmem>>, vector<1x32xf32>
      %22 = arith.index_cast %19 : i32 to index
      %c0_12 = arith.constant 0 : index
      %23 = vector.load %arg4[%22, %c0_12] : memref<128x32xf32, #tpu.memory_space<vmem>>, vector<1x32xf32>
      %24 = arith.mulf %21, %23 : vector<1x32xf32>
      %25 = arith.index_cast %13 : i32 to index
      %c0_13 = arith.constant 0 : index
      %26 = vector.load %arg8[%25, %c0_13] : memref<128x32xf32, #tpu.memory_space<vmem>>, vector<1x32xf32>
      tpu.vector_store %arg8[%25, %c0_13], %24 {strides = array<i32>} : memref<128x32xf32, #tpu.memory_space<vmem>>, vector<1x32xf32>,
    }
    %c128_i32_1 = arith.constant 128 : i32
    %c0 = arith.constant 0 : index
    %c0_2 = arith.constant 0 : index
    %2 = vector.load %arg8[%c0, %c0_2] : memref<128x32xf32, #tpu.memory_space<vmem>>, vector<128x32xf32>
    %c0_3 = arith.constant 0 : index
    %c0_4 = arith.constant 0 : index
    %3 = vector.load %arg5[%c0_3, %c0_4] : memref<1x32xf32, #tpu.memory_space<vmem>>, vector<1x32xf32>
    %4 = vector.broadcast %3 : vector<1x32xf32> to vector<128x32xf32>
    %5 = arith.mulf %2, %4 : vector<128x32xf32>
    %cst = arith.constant dense<0.000000e+00> : vector<128xf32>
    %6 = vector.multi_reduction <add>, %5, %cst [1] : vector<128x32xf32> to vector<128xf32>
    %c0_5 = arith.constant 0 : index
    %7 = memref.load %arg6[%c0_5] : memref<1xf32, #tpu.memory_space<smem>>
    %8 = vector.broadcast %7 : f32 to vector<128xf32>
    %9 = arith.addf %6, %8 : vector<128xf32>
    %10 = vector.shape_cast %9 : vector<128xf32> to vector<1x1x128xf32>
    %c0_6 = arith.constant 0 : index
    %c0_7 = arith.constant 0 : index
    %c0_8 = arith.constant 0 : index
    %11 = vector.load %arg7[%c0_6, %c0_7, %c0_8] : memref<1x1x128xf32, #tpu.memory_space<vmem>>, vector<1x1x128xf32>
    tpu.vector_store %arg7[%c0_6, %c0_7, %c0_8], %10 {strides = array<i32>} : memref<1x1x128xf32, #tpu.memory_space<vmem>>, vector<1x1x128xf32>,
    return
  }
  func.func @transform_0(%arg0: i32, %arg1: memref<128xi32, #tpu.memory_space<smem>>, %arg2: memref<128xi32, #tpu.memory_space<smem>>) -> (i32, i32) {
    %c0_i32 = arith.constant 0 : i32
    %c0_i32_0 = arith.constant 0 : i32
    %c0_i32_1 = arith.constant 0 : i32
    return %c0_i32, %c0_i32_0 : i32, i32
  }
  func.func @transform_1(%arg0: i32, %arg1: memref<128xi32, #tpu.memory_space<smem>>, %arg2: memref<128xi32, #tpu.memory_space<smem>>) -> (i32, i32) {
    %c0_i32 = arith.constant 0 : i32
    %c0_i32_0 = arith.constant 0 : i32
    %c0_i32_1 = arith.constant 0 : i32
    return %c0_i32, %c0_i32_0 : i32, i32
  }
  func.func @transform_2(%arg0: i32, %arg1: memref<128xi32, #tpu.memory_space<smem>>, %arg2: memref<128xi32, #tpu.memory_space<smem>>) -> (i32, i32) {
    %c0_i32 = arith.constant 0 : i32
    %c0_i32_0 = arith.constant 0 : i32
    %c0_i32_1 = arith.constant 0 : i32
    return %c0_i32, %c0_i32_0 : i32, i32
  }
  func.func @transform_3(%arg0: i32, %arg1: memref<128xi32, #tpu.memory_space<smem>>, %arg2: memref<128xi32, #tpu.memory_space<smem>>) -> i32 {
    %c0_i32 = arith.constant 0 : i32
    %c0_i32_0 = arith.constant 0 : i32
    return %c0_i32 : i32
  }
  func.func @transform_4(%arg0: i32, %arg1: memref<128xi32, #tpu.memory_space<smem>>, %arg2: memref<128xi32, #tpu.memory_space<smem>>) -> (i32, i32, i32) {
    %c0_i32 = arith.constant 0 : i32
    %c0_i32_0 = arith.constant 0 : i32
    %c0_i32_1 = arith.constant 0 : i32
    return %arg0, %c0_i32, %c0_i32_0 : i32, i32, i32
  }
}

</mosaic_0001>

<llo_original>
// kernel: tpu_custom_call.1
$region0: #{tpu_custom_call.1}
  #allocation0 [shape = 'u32[]', space=smem, size = 0x4, offset = 0x4, fixed_abs, tag = 'smem constant byte address 0x4 - core index']
  #allocation1 [shape = 'u32[72,128]{1,0:T(1,128)}', space=vmem, size = 0x9000, scoped, tag = 'internal scratch']
  #allocation2 [shape = 'f32[128,32]{1,0:T(8,128)}', space=vmem, size = 0x10000, scoped, tag = 'scratch operand']
  #allocation3 [shape = 's32[1]{0}', space=sflag, size = 0x4, scoped, tag = 'scoped memory for tpu_custom_call.1']
  #allocation4 [shape = 'u8[512]{0}', space=smem, size = 0x200, scoped, tag = 'prefetched SMEM operand 0']
  #allocation5 [shape = 'u8[512]{0}', space=smem, size = 0x200, scoped, tag = 'prefetched SMEM operand 1']
  #allocation6 [shape = 'f32[1]{0:T(128)S(6)}', space=smem, size = 0x200, scoped, tag = 'scoped memory for tpu_custom_call.1']
  %s0 = inlined_call_operand.vmem [shape: s32[128], index: 0, kind: input, shape index: {}]
  %s1 = inlined_call_operand.vmem [shape: s32[128], index: 1, kind: input, shape index: {}]
  %s2 = inlined_call_operand.vmem [shape: f32[64,32], index: 2, kind: input, shape index: {}]
  %s3 = inlined_call_operand.vmem [shape: f32[128,32], index: 3, kind: input, shape index: {}]
  %s4 = inlined_call_operand.vmem [shape: f32[1,32], index: 4, kind: input, shape index: {}]
  %s5 = inlined_call_operand.<no memory space> [shape: f32[1], index: 5, kind: input, shape index: {}]
  %s6 = inlined_call_operand.hbm [shape: f32[1,1,128], index: 6, kind: output, shape index: {}]
  %s7 = sld [smem:[#allocation0]]
  $region33: #{tpu_custom_call.1} parent=0
    _
  %s9 = ssub.s32 1, %s7
  %s10 = scalar_select 0, %s9, %s7
  %s12 = sshll.u32 %s0, 4
  %s13 = int_to_ptr.vmem [resolvable:$true] %s12
  %15 = dma.vmem_to_smem %s13, 16, [#allocation4], [#allocation3]
  %s17 = sshll.u32 %s1, 4
  %s18 = int_to_ptr.vmem [resolvable:$true] %s17
  %20 = dma.vmem_to_smem %s18, 16, [#allocation5], [#allocation3]
  %21 = sst [smem:[#allocation6]] %s5
  %23 = dma.done [#allocation3], 32
  %24 = sfence
  $region1: #{tpu_custom_call.1} parent=0
    #allocation7 [shape = 'u8[512]{0}', space=vmem, size = 0x400, scoped, tag = 'output window, operand 0, single buffered']
    #allocation8 [shape = 's32[1]{0}', space=sflag, size = 0x4, scoped, tag = 'scoped memory for tpu_custom_call.1']
    %25 = vsyncpa [#allocation8], 0
    // Predicated region
    $region2: #{tpu_custom_call.1} parent=1 // pred_check
      _
    $region3: #{tpu_custom_call.1} parent=1 // pred_check_branch
      %27 = sbr.rel (0) target = $region5
    $region4: #{tpu_custom_call.1} parent=1 // pred_region
      _
    $region5: #{tpu_custom_call.1} parent=1 // pred_fallthru
      _
    // Predicated region
    $region6: #{tpu_custom_call.1} parent=1 // pred_check
      _
    $region7: #{tpu_custom_call.1} parent=1 // pred_check_branch
      %29 = sbr.rel (0) target = $region9
    $region8: #{tpu_custom_call.1} parent=1 // pred_region
      _
    $region9: #{tpu_custom_call.1} parent=1 // pred_fallthru
      _
    // Predicated region
    $region10: #{tpu_custom_call.1} parent=1 // pred_check
      _
    $region11: #{tpu_custom_call.1} parent=1 // pred_check_branch
      %31 = sbr.rel (0) target = $region13
    $region12: #{tpu_custom_call.1} parent=1 // pred_region
      _
    $region13: #{tpu_custom_call.1} parent=1 // pred_fallthru
      _
    // Predicated region
    $region14: #{tpu_custom_call.1} parent=1 // pred_check
      _
    $region15: #{tpu_custom_call.1} parent=1 // pred_check_branch
      %33 = sbr.rel (0) target = $region17
    $region16: #{tpu_custom_call.1} parent=1 // pred_region
      _
    $region17: #{tpu_custom_call.1} parent=1 // pred_fallthru
      _
    %s34 = smul.u32 0, 128
    loop: start=0, step=1, limit=128
    $region18: #{tpu_custom_call.1} parent=1 // loop_pre_header
      _
    $region19: #{tpu_custom_call.1} parent=1 // loop_header
      %s36 = sphi 0, %s40
      %p37 = scmp.ge.s32.totalorder %s36, 128
    $region20: #{tpu_custom_call.1} parent=1 // loop_header_branch
      %39 = sbr.rel (%p37) target = $region24
    $region21: #{tpu_custom_call.1} parent=1 // loop_body
      %s41 = sadd.s32 %s34, %s36
      %s42 = sld [smem:[#allocation4 + %s41]]
      %s43 = sld [smem:[#allocation5 + %s41]]
      %s44 = scalar_lea.vmem %s2, %s42
      %v45 = vld [vmem:[%s44] sm:$0x1]
      %s46 = scalar_lea.vmem %s3, %s43
      %v47 = vld [vmem:[%s46] sm:$0x1]
      %v48 = vmul.f32 %v45, %v47
      %s49 = scalar_lea.vmem [#allocation2], %s36
      %vm50 = vcmask 253952
      %51 = vst.msk [vmem:[%s49] sm:$0x1] %vm50, %v48
    $region22: #{tpu_custom_call.1} parent=1 // loop_footer
      %s40 = sadd.s32 1, %s36
    $region23: #{tpu_custom_call.1} parent=1 // loop_footer_branch
      %35 = sbr.rel target = $region19
    $region24: #{tpu_custom_call.1} parent=1 // loop_exit
      _
    %v52 = vld [vmem:[#allocation2] sm:$0xff]
    %v53 = vld [vmem:[#allocation2 + $0x8] sm:$0xff]
    %v54 = vld [vmem:[#allocation2 + $0x10] sm:$0xff]
    %v55 = vld [vmem:[#allocation2 + $0x18] sm:$0xff]
    %v56 = vld [vmem:[#allocation2 + $0x20] sm:$0xff]
    %v57 = vld [vmem:[#allocation2 + $0x28] sm:$0xff]
    %v58 = vld [vmem:[#allocation2 + $0x30] sm:$0xff]
    %v59 = vld [vmem:[#allocation2 + $0x38] sm:$0xff]
    %v60 = vld [vmem:[#allocation2 + $0x40] sm:$0xff]
    %v61 = vld [vmem:[#allocation2 + $0x48] sm:$0xff]
    %v62 = vld [vmem:[#allocation2 + $0x50] sm:$0xff]
    %v63 = vld [vmem:[#allocation2 + $0x58] sm:$0xff]
    %v64 = vld [vmem:[#allocation2 + $0x60] sm:$0xff]
    %v65 = vld [vmem:[#allocation2 + $0x68] sm:$0xff]
    %v66 = vld [vmem:[#allocation2 + $0x70] sm:$0xff]
    %v67 = vld [vmem:[#allocation2 + $0x78] sm:$0xff]
    %v68 = vld [vmem:[%s4] sm:$0x1]
    %v70 = vperm.slane %v68, 0
    %v72 = vmul.f32 %v52, %v70
    %v73 = vmul.f32 %v53, %v70
    %v74 = vmul.f32 %v54, %v70
    %v75 = vmul.f32 %v55, %v70
    %v76 = vmul.f32 %v56, %v70
    %v77 = vmul.f32 %v57, %v70
    %v78 = vmul.f32 %v58, %v70
    %v79 = vmul.f32 %v59, %v70
    %v80 = vmul.f32 %v60, %v70
    %v81 = vmul.f32 %v61, %v70
    %v82 = vmul.f32 %v62, %v70
    %v83 = vmul.f32 %v63, %v70
    %v84 = vmul.f32 %v64, %v70
    %v85 = vmul.f32 %v65, %v70
    %v86 = vmul.f32 %v66, %v70
    %v87 = vmul.f32 %v67, %v70
    %vm88 = vcmask 261120
    %v89 = vsel %vm88, %v72, 0.0
    %90 = vadd.xlane.f32.xlu0 %v89
    %v91 = vpop.xlane.xlu0 %90
    %v92 = vsel %vm88, %v73, 0.0
    %93 = vadd.xlane.f32.xlu0 %v92
    %v94 = vpop.xlane.xlu0 %93
    %v95 = vsel %vm88, %v74, 0.0
    %96 = vadd.xlane.f32.xlu0 %v95
    %v97 = vpop.xlane.xlu0 %96
    %v98 = vsel %vm88, %v75, 0.0
    %99 = vadd.xlane.f32.xlu0 %v98
    %v100 = vpop.xlane.xlu0 %99
    %v101 = vsel %vm88, %v76, 0.0
    %102 = vadd.xlane.f32.xlu0 %v101
    %v103 = vpop.xlane.xlu0 %102
    %v104 = vsel %vm88, %v77, 0.0
    %105 = vadd.xlane.f32.xlu0 %v104
    %v106 = vpop.xlane.xlu0 %105
    %v107 = vsel %vm88, %v78, 0.0
    %108 = vadd.xlane.f32.xlu0 %v107
    %v109 = vpop.xlane.xlu0 %108
    %v110 = vsel %vm88, %v79, 0.0
    %111 = vadd.xlane.f32.xlu0 %v110
    %v112 = vpop.xlane.xlu0 %111
    %v113 = vsel %vm88, %v80, 0.0
    %114 = vadd.xlane.f32.xlu0 %v113
    %v115 = vpop.xlane.xlu0 %114
    %v116 = vsel %vm88, %v81, 0.0
    %117 = vadd.xlane.f32.xlu0 %v116
    %v118 = vpop.xlane.xlu0 %117
    %v119 = vsel %vm88, %v82, 0.0
    %120 = vadd.xlane.f32.xlu0 %v119
    %v121 = vpop.xlane.xlu0 %120
    %v122 = vsel %vm88, %v83, 0.0
    %123 = vadd.xlane.f32.xlu0 %v122
    %v124 = vpop.xlane.xlu0 %123
    %v125 = vsel %vm88, %v84, 0.0
    %126 = vadd.xlane.f32.xlu0 %v125
    %v127 = vpop.xlane.xlu0 %126
    %v128 = vsel %vm88, %v85, 0.0
    %129 = vadd.xlane.f32.xlu0 %v128
    %v130 = vpop.xlane.xlu0 %129
    %v131 = vsel %vm88, %v86, 0.0
    %132 = vadd.xlane.f32.xlu0 %v131
    %v133 = vpop.xlane.xlu0 %132
    %v134 = vsel %vm88, %v87, 0.0
    %135 = vadd.xlane.f32.xlu0 %v134
    %v136 = vpop.xlane.xlu0 %135
    %s137 = sld [smem:[#allocation6]]
    %v138 = vstv %s137
    %v139 = vadd.f32 %v91, %v138
    %v140 = vadd.f32 %v94, %v138
    %v141 = vadd.f32 %v97, %v138
    %v142 = vadd.f32 %v100, %v138
    %v143 = vadd.f32 %v103, %v138
    %v144 = vadd.f32 %v106, %v138
    %v145 = vadd.f32 %v109, %v138
    %v146 = vadd.f32 %v112, %v138
    %v147 = vadd.f32 %v115, %v138
    %v148 = vadd.f32 %v118, %v138
    %v149 = vadd.f32 %v121, %v138
    %v150 = vadd.f32 %v124, %v138
    %v151 = vadd.f32 %v127, %v138
    %v152 = vadd.f32 %v130, %v138
    %v153 = vadd.f32 %v133, %v138
    %v154 = vadd.f32 %v136, %v138
    %v171 = vlaneseq
    %v172 = vand.u32 %v171, 127
    %v173 = vperm.slane %v139, %v172
    %v174 = vadd.s32 %v172, 4294967288
    %v175 = vperm.slane %v140, %v174
    %vm176 = vcmask 130112
    %v177 = vsel %vm176, %v175, %v173
    %v178 = vadd.s32 %v172, 4294967280
    %v179 = vperm.slane %v141, %v178
    %vm180 = vcmask 195712
    %v181 = vsel %vm180, %v179, %v177
    %v182 = vadd.s32 %v172, 4294967272
    %v183 = vperm.slane %v142, %v182
    %vm184 = vcmask 261312
    %v185 = vsel %vm184, %v183, %v181
    %v186 = vadd.s32 %v172, 4294967264
    %v187 = vperm.slane %v143, %v186
    %vm188 = vcmask 326912
    %v189 = vsel %vm188, %v187, %v185
    %v190 = vadd.s32 %v172, 4294967256
    %v191 = vperm.slane %v144, %v190
    %vm192 = vcmask 392512
    %v193 = vsel %vm192, %v191, %v189
    %v194 = vadd.s32 %v172, 4294967248
    %v195 = vperm.slane %v145, %v194
    %vm196 = vcmask 458112
    %v197 = vsel %vm196, %v195, %v193
    %v198 = vadd.s32 %v172, 4294967240
    %v199 = vperm.slane %v146, %v198
    %vm200 = vcmask 523712
    %v201 = vsel %vm200, %v199, %v197
    %v202 = vadd.s32 %v172, 4294967232
    %v203 = vperm.slane %v147, %v202
    %vm204 = vcmask 589312
    %v205 = vsel %vm204, %v203, %v201
    %v206 = vadd.s32 %v172, 4294967224
    %v207 = vperm.slane %v148, %v206
    %vm208 = vcmask 654912
    %v209 = vsel %vm208, %v207, %v205
    %v210 = vadd.s32 %v172, 4294967216
    %v211 = vperm.slane %v149, %v210
    %vm212 = vcmask 720512
    %v213 = vsel %vm212, %v211, %v209
    %v214 = vadd.s32 %v172, 4294967208
    %v215 = vperm.slane %v150, %v214
    %vm216 = vcmask 786112
    %v217 = vsel %vm216, %v215, %v213
    %v218 = vadd.s32 %v172, 4294967200
    %v219 = vperm.slane %v151, %v218
    %vm220 = vcmask 851712
    %v221 = vsel %vm220, %v219, %v217
    %v222 = vadd.s32 %v172, 4294967192
    %v223 = vperm.slane %v152, %v222
    %vm224 = vcmask 917312
    %v225 = vsel %vm224, %v223, %v221
    %v226 = vadd.s32 %v172, 4294967184
    %v227 = vperm.slane %v153, %v226
    %vm228 = vcmask 982912
    %v229 = vsel %vm228, %v227, %v225
    %v230 = vadd.s32 %v172, 4294967176
    %v231 = vperm.slane %v154, %v230
    %vm232 = vcmask 1048512
    %v233 = vsel %vm232, %v231, %v229
    %235 = vst [vmem:[#allocation7] sm:$0x1] %v233
    // Predicated region
    $region25: #{tpu_custom_call.1} parent=1 // pred_check
      _
    $region26: #{tpu_custom_call.1} parent=1 // pred_check_branch
      %237 = sbr.rel (0) target = $region28
    $region27: #{tpu_custom_call.1} parent=1 // pred_region
      %239 = vsyncadd [#allocation8], 0
      %s241 = sshll.u32 [#allocation7], 4
      %s242 = int_to_ptr.vmem [resolvable:$true] %s241
      %s243 = sshll.u32 %s6, 4
      %s244 = int_to_ptr.hbm [resolvable:$true] %s243
      %246 = dma.vmem_to_hbm [thread:$0]  %s242, 16, %s244, [#allocation8]
    $region28: #{tpu_custom_call.1} parent=1 // pred_fallthru
      _
    // Predicated region
    $region29: #{tpu_custom_call.1} parent=1 // pred_check
      _
    $region30: #{tpu_custom_call.1} parent=1 // pred_check_branch
      %248 = sbr.rel (0) target = $region32
    $region31: #{tpu_custom_call.1} parent=1 // pred_region
      %250 = dma.done [#allocation8], 16
    $region32: #{tpu_custom_call.1} parent=1 // pred_fallthru
      _
    %251 = vsyncpa [#allocation8], 1

</llo_original>
